<compile_context>
chip_gen: v5e
topology: v5e:2x2
jax: 0.10.0
libtpu: 0.0.40
codegen_flags: <defaults>
</compile_context>

<pallas_src>
import jax
import jax.numpy as jnp
from jax.experimental import pallas as pl
from jax.experimental.pallas import tpu as pltpu

# ----------------------------- config (small) --------------------------------
ATARI_NUM_ACTIONS = 18
GAME_NAMES = ["Pong", "Breakout", "MsPacman", "Qbert"]
LIMITED_ACTION_TO_FULL_ACTION = {
    "Pong": [0, 1, 3, 4, 11, 12],
    "Breakout": [0, 1, 3, 4],
    "MsPacman": [0, 2, 3, 4, 5, 6, 7, 8, 9],
    "Qbert": [0, 1, 2, 3, 4, 5],
}

N_ENVS = 2
H = W = 16
C = 3
PATCH = 4
T_TOKENS = (H // PATCH) * (W // PATCH)      # 16 tokens per frame
NT = N_ENVS * T_TOKENS                      # 32 rows
P_DIM = C * PATCH * PATCH                   # 48 patch features
E_DIM = 32                                  # embedding dim
VOCAB = 64                                  # codebook size
K_HEADS = 2                                 # critic ensemble size

LANE = 128                                  # lane width; pad small dims to it
P_PAD = LANE                                # 48  -> 128
E_PAD = LANE                                # 32  -> 128
VOCAB_PAD = LANE                            # 64  -> 128
A_PAD = LANE                                # 18  -> 128
GAMES_PAD = 8                               # 4   -> 8 (sublane alignment)


# ----------------------------- fused Pallas kernel ---------------------------
def _policy_fused_kernel(
    patches_ref,    # (NT, P_PAD)              bf16 (1/255 folded into w_in)
    w_in_ref,       # (P_PAD, E_PAD)           bf16
    codebook_ref,   # (E_PAD, VOCAB_PAD)       bf16
    emb_ref,        # (VOCAB_PAD, E_PAD)       bf16
    wq_ref,         # (K_HEADS*E_PAD, A_PAD)   bf16 (heads stacked on rows)
    bq_ref,         # (K_HEADS, A_PAD)         f32
    masks_ref,      # (GAMES_PAD, A_PAD)       bf16 (0/1)
    env_ids_ref,    # (N_ENVS, 1)              int32
    act_ref,        # (N_ENVS, LANE)           int32 out (lane-dense slab)
):
    neg_inf = jnp.float32(-jnp.inf)

    # ---- tokenizer.encode: patch projection for ALL patches (full encode) ---
    z = jnp.dot(patches_ref[...], w_in_ref[...],
                preferred_element_type=jnp.float32)              # (NT, E_PAD)
    z_b = z.astype(jnp.bfloat16)

    # ---- pick the last token row of each env with a one-hot MXU matmul ------
    # (bit-identical to row slicing; avoids in-kernel concatenate / gathers)
    # TODO(synk): the real world_model is a transformer over the full
    # token_buffer; the synthetic per-token critic only consumes the last token.
    row_iota = jax.lax.broadcasted_iota(jnp.int32, (N_ENVS, NT), 0)
    col_iota = jax.lax.broadcasted_iota(jnp.int32, (N_ENVS, NT), 1)
    sel = (col_iota == (row_iota + 1) * T_TOKENS - 1).astype(jnp.bfloat16)
    z_last = jnp.dot(sel, z_b, preferred_element_type=jnp.float32)  # (N, E_PAD)

    # ---- codebook logits only for the rows choose_action consumes -----------
    logits_last = jnp.dot(z_last.astype(jnp.bfloat16), codebook_ref[...],
                          preferred_element_type=jnp.float32)    # (N, VOCAB_PAD)

    # ---- vocab argmax (first-max tie-break, padded vocab masked out) --------
    vocab_iota = jax.lax.broadcasted_iota(jnp.int32, (N_ENVS, VOCAB_PAD), 1)
    logits_valid = jnp.where(vocab_iota < VOCAB, logits_last, neg_inf)
    tok_max = jnp.max(logits_valid, axis=-1, keepdims=True)
    tokens = jnp.min(jnp.where(logits_valid == tok_max, vocab_iota, VOCAB_PAD),
                     axis=-1, keepdims=True)                     # (N, 1) int32

    # ---- embedding lookup as one-hot matmul (stays in VMEM/vregs) -----------
    onehot = (vocab_iota == tokens).astype(jnp.bfloat16)         # (N, VOCAB_PAD)
    emb = jnp.dot(onehot, emb_ref[...],
                  preferred_element_type=jnp.float32)            # (N, E_PAD)
    emb_b = emb.astype(jnp.bfloat16)

    # ---- critic ensemble: K heads statically unrolled, mean over heads ------
    acc = jnp.zeros((N_ENVS, A_PAD), jnp.float32)
    for k in range(K_HEADS):                                     # K_HEADS == 2
        w_k = wq_ref[k * E_PAD:(k + 1) * E_PAD, :]               # (E_PAD, A_PAD)
        acc = acc + jnp.dot(emb_b, w_k,
                            preferred_element_type=jnp.float32) + bq_ref[k:k + 1, :]
    critic = acc * (1.0 / K_HEADS)                               # (N, A_PAD)

    # ---- action-mask gather (one-hot over games) + masked first-argmax ------
    game_iota = jax.lax.broadcasted_iota(jnp.int32, (N_ENVS, GAMES_PAD), 1)
    env_onehot = (game_iota == env_ids_ref[...]).astype(jnp.bfloat16)
    env_mask = jnp.dot(env_onehot, masks_ref[...],
                       preferred_element_type=jnp.float32)       # (N, A_PAD) 0/1
    masked = jnp.where(env_mask > 0.5, critic, neg_inf)          # pads -> -inf
    act_iota = jax.lax.broadcasted_iota(jnp.int32, (N_ENVS, A_PAD), 1)
    a_max = jnp.max(masked, axis=-1, keepdims=True)
    act = jnp.min(jnp.where(masked == a_max, act_iota, A_PAD),
                  axis=-1, keepdims=True)                        # (N, 1) int32

    # lane-dense unmasked store; wrapper reads column 0
    act_ref[...] = jnp.broadcast_to(act, (N_ENVS, LANE)).astype(jnp.int32)


def _policy_fused_call(patches, params, env_ids):
    return pl.pallas_call(
        _policy_fused_kernel,
        out_shape=jax.ShapeDtypeStruct((N_ENVS, LANE), jnp.int32),
        grid=(1,),
        in_specs=[
            pl.BlockSpec((NT, P_PAD), lambda i: (0, 0)),
            pl.BlockSpec((P_PAD, E_PAD), lambda i: (0, 0)),
            pl.BlockSpec((E_PAD, VOCAB_PAD), lambda i: (0, 0)),
            pl.BlockSpec((VOCAB_PAD, E_PAD), lambda i: (0, 0)),
            pl.BlockSpec((K_HEADS * E_PAD, A_PAD), lambda i: (0, 0)),
            pl.BlockSpec((K_HEADS, A_PAD), lambda i: (0, 0)),
            pl.BlockSpec((GAMES_PAD, A_PAD), lambda i: (0, 0)),
            pl.BlockSpec((N_ENVS, 1), lambda i: (0, 0)),
        ],
        out_specs=pl.BlockSpec((N_ENVS, LANE), lambda i: (0, 0)),
        compiler_params=pltpu.CompilerParams(
            dimension_semantics=("arbitrary",),
            vmem_limit_bytes=8 * 1024 * 1024,   # working set < 200 KB
        ),
    )(patches, params["w_in"], params["codebook"], params["emb"],
      params["w_q"], params["b_q"], params["masks"], env_ids)


# ----------------------------- forward (thin glue) ----------------------------
@jax.jit
def policy_forward(obs_nhwc_u8, params, env_tokens):
    # '... H W C -> ... C H W' + patchify (layout-only glue; fuses under jit).
    # uint8 values 0..255 are exact in bf16; 1/255 is folded into w_in.
    obs = jnp.transpose(obs_nhwc_u8.astype(jnp.bfloat16), (0, 3, 1, 2))   # NCHW
    patches = obs.reshape(N_ENVS, C, H // PATCH, PATCH, W // PATCH, PATCH)
    patches = jnp.transpose(patches, (0, 2, 4, 1, 3, 5))                  # N,h,w,C,ph,pw
    patches = patches.reshape(NT, P_DIM)
    patches = jnp.pad(patches, ((0, 0), (0, P_PAD - P_DIM)))              # lane-dense

    # TODO(synk): token_buffer concat with previous actions / num_given_steps
    # trimming is host-side stateful glue; only the first-call path is modeled.
    env_ids = env_tokens.reshape(N_ENVS, 1).astype(jnp.int32)
    act_slab = _policy_fused_call(patches, params, env_ids)               # (N, 128)
    return act_slab[:, 0]                                                 # (N,) int32


# ----------------------------- deterministic setup ---------------------------
def make_params():
    key = jax.random.PRNGKey(0)
    k1, k2, k3, k4, k5 = jax.random.split(key, 5)
    return {
        "w_in": jax.random.normal(k1, (P_DIM, E_DIM), jnp.float32) * 0.1,
        "codebook": jax.random.normal(k2, (E_DIM, VOCAB), jnp.float32) * 0.1,
        "emb": jax.random.normal(k3, (VOCAB, E_DIM), jnp.float32) * 0.1,
        "w_q": jax.random.normal(k4, (K_HEADS, E_DIM, ATARI_NUM_ACTIONS), jnp.float32) * 0.1,
        "b_q": jax.random.normal(k5, (K_HEADS, ATARI_NUM_ACTIONS), jnp.float32) * 0.1,
    }


def make_action_masks():
    masks = []
    for env in GAME_NAMES:
        allowed = LIMITED_ACTION_TO_FULL_ACTION[env]
        masks.append([a in allowed for a in range(ATARI_NUM_ACTIONS)])
    return jnp.array(masks, dtype=jnp.bool_)


def _pad_to(x, shape, dtype):
    pads = [(0, t - s) for s, t in zip(x.shape, shape)]
    return jnp.pad(x, pads).astype(dtype)


def prepare_params(raw, action_masks_bool):
    """One-time folds/pads: 1/255 into w_in, lane-pad everything to 128, bf16."""
    w_q = _pad_to(raw["w_q"], (K_HEADS, E_PAD, A_PAD), jnp.bfloat16)
    return {
        "w_in": _pad_to(raw["w_in"] * (1.0 / 255.0), (P_PAD, E_PAD), jnp.bfloat16),
        "codebook": _pad_to(raw["codebook"], (E_PAD, VOCAB_PAD), jnp.bfloat16),
        "emb": _pad_to(raw["emb"], (VOCAB_PAD, E_PAD), jnp.bfloat16),
        "w_q": w_q.reshape(K_HEADS * E_PAD, A_PAD),                 # heads on rows
        "b_q": _pad_to(raw["b_q"], (K_HEADS, A_PAD), jnp.float32),
        "masks": _pad_to(action_masks_bool.astype(jnp.float32),
                         (GAMES_PAD, A_PAD), jnp.bfloat16),
    }


if __name__ == "__main__":
    key = jax.random.PRNGKey(0)
    obs = jax.random.randint(key, (N_ENVS, H, W, C), 0, 256,
                             dtype=jnp.int32).astype(jnp.uint8)
    action_masks_bool = make_action_masks()
    params = prepare_params(make_params(), action_masks_bool)
    env_tokens = jnp.arange(N_ENVS, dtype=jnp.int32)

    act = policy_forward(obs, params, env_tokens)
    act = jax.block_until_ready(act)

    assert act.shape == (N_ENVS,) and act.dtype == jnp.int32
    # sanity: chosen actions must lie in each env's allowed-action set
    assert bool(jnp.all(action_masks_bool[env_tokens, act]))
    print("KERNEL_OK")
</pallas_src>

<mosaic_0001>
module attributes {stable_mosaic.version = 11 : i64} {
  func.func @_policy_fused_kernel(%arg0: i32, %arg1: memref<32x128xbf16, #tpu.memory_space<vmem>>, %arg2: memref<128x128xbf16, #tpu.memory_space<vmem>>, %arg3: memref<128x128xbf16, #tpu.memory_space<vmem>>, %arg4: memref<128x128xbf16, #tpu.memory_space<vmem>>, %arg5: memref<256x128xbf16, #tpu.memory_space<vmem>>, %arg6: memref<2x128xf32, #tpu.memory_space<vmem>>, %arg7: memref<8x128xbf16, #tpu.memory_space<vmem>>, %arg8: memref<2x1xi32, #tpu.memory_space<vmem>>, %arg9: memref<2x128xi32, #tpu.memory_space<vmem>>) attributes {dimension_semantics = [#tpu.dimension_semantics<arbitrary>], iteration_bounds = array<i64: 1>, scalar_prefetch = 0 : i64, scratch_operands = 0 : i64, tpu.core_type = #tpu.core_type<tc>, window_params = [{pipeline_mode = #tpu.pipeline_mode<synchronous>, transform_indices = @transform_0, window_bounds = array<i64: 32, 128>}, {pipeline_mode = #tpu.pipeline_mode<synchronous>, transform_indices = @transform_1, window_bounds = array<i64: 128, 128>}, {pipeline_mode = #tpu.pipeline_mode<synchronous>, transform_indices = @transform_2, window_bounds = array<i64: 128, 128>}, {pipeline_mode = #tpu.pipeline_mode<synchronous>, transform_indices = @transform_3, window_bounds = array<i64: 128, 128>}, {pipeline_mode = #tpu.pipeline_mode<synchronous>, transform_indices = @transform_4, window_bounds = array<i64: 256, 128>}, {pipeline_mode = #tpu.pipeline_mode<synchronous>, transform_indices = @transform_5, window_bounds = array<i64: 2, 128>}, {pipeline_mode = #tpu.pipeline_mode<synchronous>, transform_indices = @transform_6, window_bounds = array<i64: 8, 128>}, {pipeline_mode = #tpu.pipeline_mode<synchronous>, transform_indices = @transform_7, window_bounds = array<i64: 2, 1>}, {pipeline_mode = #tpu.pipeline_mode<synchronous>, transform_indices = @transform_8, window_bounds = array<i64: 2, 128>}]} {
    %c0 = arith.constant 0 : index
    %c0_0 = arith.constant 0 : index
    %0 = vector.load %arg1[%c0, %c0_0] : memref<32x128xbf16, #tpu.memory_space<vmem>>, vector<32x128xbf16>
    %c0_1 = arith.constant 0 : index
    %c0_2 = arith.constant 0 : index
    %1 = vector.load %arg2[%c0_1, %c0_2] : memref<128x128xbf16, #tpu.memory_space<vmem>>, vector<128x128xbf16>
    %cst = arith.constant dense<0.000000e+00> : vector<32x128xf32>
    %2 = tpu.matmul %0, %1, %cst {dimension_numbers = #tpu.dot_dimension_numbers<[1], [0], [0], [1], [0, 0, 1, 1], [], []>} : vector<32x128xbf16>, vector<128x128xbf16>, vector<32x128xf32> -> vector<32x128xf32>
    %3 = arith.truncf %2 : vector<32x128xf32> to vector<32x128xbf16>
    %4 = tpu.iota {dimensions = array<i32: 0>} : vector<2x32xi32>
    %5 = tpu.iota {dimensions = array<i32: 1>} : vector<2x32xi32>
    %c1_i32 = arith.constant 1 : i32
    %6 = vector.broadcast %c1_i32 : i32 to vector<2x32xi32>
    %7 = arith.addi %4, %6 : vector<2x32xi32>
    %c16_i32 = arith.constant 16 : i32
    %8 = vector.broadcast %c16_i32 : i32 to vector<2x32xi32>
    %9 = arith.muli %7, %8 : vector<2x32xi32>
    %c1_i32_3 = arith.constant 1 : i32
    %10 = vector.broadcast %c1_i32_3 : i32 to vector<2x32xi32>
    %11 = arith.subi %9, %10 : vector<2x32xi32>
    %12 = arith.cmpi eq, %5, %11 : vector<2x32xi32>
    %13 = arith.extui %12 : vector<2x32xi1> to vector<2x32xi32>
    %14 = arith.sitofp %13 : vector<2x32xi32> to vector<2x32xf32>
    %15 = arith.truncf %14 : vector<2x32xf32> to vector<2x32xbf16>
    %cst_4 = arith.constant dense<0.000000e+00> : vector<2x128xf32>
    %16 = tpu.matmul %15, %3, %cst_4 {dimension_numbers = #tpu.dot_dimension_numbers<[1], [0], [0], [1], [0, 0, 1, 1], [], []>} : vector<2x32xbf16>, vector<32x128xbf16>, vector<2x128xf32> -> vector<2x128xf32>
    %17 = arith.truncf %16 : vector<2x128xf32> to vector<2x128xbf16>
    %c0_5 = arith.constant 0 : index
    %c0_6 = arith.constant 0 : index
    %18 = vector.load %arg3[%c0_5, %c0_6] : memref<128x128xbf16, #tpu.memory_space<vmem>>, vector<128x128xbf16>
    %cst_7 = arith.constant dense<0.000000e+00> : vector<2x128xf32>
    %19 = tpu.matmul %17, %18, %cst_7 {dimension_numbers = #tpu.dot_dimension_numbers<[1], [0], [0], [1], [0, 0, 1, 1], [], []>} : vector<2x128xbf16>, vector<128x128xbf16>, vector<2x128xf32> -> vector<2x128xf32>
    %20 = tpu.iota {dimensions = array<i32: 1>} : vector<2x128xi32>
    %c64_i32 = arith.constant 64 : i32
    %21 = vector.broadcast %c64_i32 : i32 to vector<2x128xi32>
    %22 = arith.cmpi slt, %20, %21 : vector<2x128xi32>
    %cst_8 = arith.constant 0xFF800000 : f32
    %23 = vector.broadcast %cst_8 : f32 to vector<2x128xf32>
    %24 = arith.select %22, %19, %23 : vector<2x128xi1>, vector<2x128xf32>
    %cst_9 = arith.constant dense<0xFF800000> : vector<2xf32>
    %25 = vector.multi_reduction <maximumf>, %24, %cst_9 [1] : vector<2x128xf32> to vector<2xf32>
    %26 = vector.shape_cast %25 : vector<2xf32> to vector<2x1xf32>
    %27 = vector.broadcast %26 : vector<2x1xf32> to vector<2x128xf32>
    %28 = arith.cmpf oeq, %24, %27 : vector<2x128xf32>
    %c128_i32 = arith.constant 128 : i32
    %29 = vector.broadcast %c128_i32 : i32 to vector<2x128xi32>
    %30 = arith.select %28, %20, %29 : vector<2x128xi1>, vector<2x128xi32>
    %cst_10 = arith.constant dense<2147483647> : vector<2xi32>
    %31 = vector.multi_reduction <minsi>, %30, %cst_10 [1] : vector<2x128xi32> to vector<2xi32>
    %32 = vector.shape_cast %31 : vector<2xi32> to vector<2x1xi32>
    %33 = vector.broadcast %32 : vector<2x1xi32> to vector<2x128xi32>
    %34 = arith.cmpi eq, %20, %33 : vector<2x128xi32>
    %35 = arith.extui %34 : vector<2x128xi1> to vector<2x128xi32>
    %36 = arith.sitofp %35 : vector<2x128xi32> to vector<2x128xf32>
    %37 = arith.truncf %36 : vector<2x128xf32> to vector<2x128xbf16>
    %c0_11 = arith.constant 0 : index
    %c0_12 = arith.constant 0 : index
    %38 = vector.load %arg4[%c0_11, %c0_12] : memref<128x128xbf16, #tpu.memory_space<vmem>>, vector<128x128xbf16>
    %cst_13 = arith.constant dense<0.000000e+00> : vector<2x128xf32>
    %39 = tpu.matmul %37, %38, %cst_13 {dimension_numbers = #tpu.dot_dimension_numbers<[1], [0], [0], [1], [0, 0, 1, 1], [], []>} : vector<2x128xbf16>, vector<128x128xbf16>, vector<2x128xf32> -> vector<2x128xf32>
    %40 = arith.truncf %39 : vector<2x128xf32> to vector<2x128xbf16>
    %cst_14 = arith.constant 0.000000e+00 : f32
    %41 = vector.broadcast %cst_14 : f32 to vector<2x128xf32>
    %c0_15 = arith.constant 0 : index
    %c0_16 = arith.constant 0 : index
    %42 = vector.load %arg5[%c0_15, %c0_16] : memref<256x128xbf16, #tpu.memory_space<vmem>>, vector<128x128xbf16>
    %cst_17 = arith.constant dense<0.000000e+00> : vector<2x128xf32>
    %43 = tpu.matmul %40, %42, %cst_17 {dimension_numbers = #tpu.dot_dimension_numbers<[1], [0], [0], [1], [0, 0, 1, 1], [], []>} : vector<2x128xbf16>, vector<128x128xbf16>, vector<2x128xf32> -> vector<2x128xf32>
    %44 = arith.addf %41, %43 : vector<2x128xf32>
    %c0_18 = arith.constant 0 : index
    %c0_19 = arith.constant 0 : index
    %45 = vector.load %arg6[%c0_18, %c0_19] : memref<2x128xf32, #tpu.memory_space<vmem>>, vector<1x128xf32>
    %46 = vector.broadcast %45 : vector<1x128xf32> to vector<2x128xf32>
    %47 = arith.addf %44, %46 : vector<2x128xf32>
    %c128 = arith.constant 128 : index
    %c0_20 = arith.constant 0 : index
    %48 = vector.load %arg5[%c128, %c0_20] : memref<256x128xbf16, #tpu.memory_space<vmem>>, vector<128x128xbf16>
    %cst_21 = arith.constant dense<0.000000e+00> : vector<2x128xf32>
    %49 = tpu.matmul %40, %48, %cst_21 {dimension_numbers = #tpu.dot_dimension_numbers<[1], [0], [0], [1], [0, 0, 1, 1], [], []>} : vector<2x128xbf16>, vector<128x128xbf16>, vector<2x128xf32> -> vector<2x128xf32>
    %50 = arith.addf %47, %49 : vector<2x128xf32>
    %c1 = arith.constant 1 : index
    %c0_22 = arith.constant 0 : index
    %51 = vector.load %arg6[%c1, %c0_22] : memref<2x128xf32, #tpu.memory_space<vmem>>, vector<1x128xf32>
    %52 = vector.broadcast %51 : vector<1x128xf32> to vector<2x128xf32>
    %53 = arith.addf %50, %52 : vector<2x128xf32>
    %cst_23 = arith.constant 5.000000e-01 : f32
    %54 = vector.broadcast %cst_23 : f32 to vector<2x128xf32>
    %55 = arith.mulf %53, %54 : vector<2x128xf32>
    %56 = tpu.iota {dimensions = array<i32: 1>} : vector<2x8xi32>
    %c0_24 = arith.constant 0 : index
    %c0_25 = arith.constant 0 : index
    %57 = vector.load %arg8[%c0_24, %c0_25] : memref<2x1xi32, #tpu.memory_space<vmem>>, vector<2x1xi32>
    %58 = vector.broadcast %57 : vector<2x1xi32> to vector<2x8xi32>
    %59 = arith.cmpi eq, %56, %58 : vector<2x8xi32>
    %60 = arith.extui %59 : vector<2x8xi1> to vector<2x8xi32>
    %61 = arith.sitofp %60 : vector<2x8xi32> to vector<2x8xf32>
    %62 = arith.truncf %61 : vector<2x8xf32> to vector<2x8xbf16>
    %c0_26 = arith.constant 0 : index
    %c0_27 = arith.constant 0 : index
    %63 = vector.load %arg7[%c0_26, %c0_27] : memref<8x128xbf16, #tpu.memory_space<vmem>>, vector<8x128xbf16>
    %cst_28 = arith.constant dense<0.000000e+00> : vector<2x128xf32>
    %64 = tpu.matmul %62, %63, %cst_28 {dimension_numbers = #tpu.dot_dimension_numbers<[1], [0], [0], [1], [0, 0, 1, 1], [], []>} : vector<2x8xbf16>, vector<8x128xbf16>, vector<2x128xf32> -> vector<2x128xf32>
    %cst_29 = arith.constant 5.000000e-01 : f32
    %65 = vector.broadcast %cst_29 : f32 to vector<2x128xf32>
    %66 = arith.cmpf ogt, %64, %65 : vector<2x128xf32>
    %cst_30 = arith.constant 0xFF800000 : f32
    %67 = vector.broadcast %cst_30 : f32 to vector<2x128xf32>
    %68 = arith.select %66, %55, %67 : vector<2x128xi1>, vector<2x128xf32>
    %69 = tpu.iota {dimensions = array<i32: 1>} : vector<2x128xi32>
    %cst_31 = arith.constant dense<0xFF800000> : vector<2xf32>
    %70 = vector.multi_reduction <maximumf>, %68, %cst_31 [1] : vector<2x128xf32> to vector<2xf32>
    %71 = vector.shape_cast %70 : vector<2xf32> to vector<2x1xf32>
    %72 = vector.broadcast %71 : vector<2x1xf32> to vector<2x128xf32>
    %73 = arith.cmpf oeq, %68, %72 : vector<2x128xf32>
    %c128_i32_32 = arith.constant 128 : i32
    %74 = vector.broadcast %c128_i32_32 : i32 to vector<2x128xi32>
    %75 = arith.select %73, %69, %74 : vector<2x128xi1>, vector<2x128xi32>
    %cst_33 = arith.constant dense<2147483647> : vector<2xi32>
    %76 = vector.multi_reduction <minsi>, %75, %cst_33 [1] : vector<2x128xi32> to vector<2xi32>
    %77 = vector.shape_cast %76 : vector<2xi32> to vector<2x1xi32>
    %78 = vector.shape_cast %77 : vector<2x1xi32> to vector<2x1xi32>
    %79 = vector.broadcast %78 : vector<2x1xi32> to vector<2x128xi32>
    %c0_34 = arith.constant 0 : index
    %c0_35 = arith.constant 0 : index
    %80 = vector.load %arg9[%c0_34, %c0_35] : memref<2x128xi32, #tpu.memory_space<vmem>>, vector<2x128xi32>
    tpu.vector_store %arg9[%c0_34, %c0_35], %79 {strides = array<i32>} : memref<2x128xi32, #tpu.memory_space<vmem>>, vector<2x128xi32>,
    return
  }
  func.func @transform_0(%arg0: i32) -> (i32, i32) {
    %c0_i32 = arith.constant 0 : i32
    %c0_i32_0 = arith.constant 0 : i32
    %c0_i32_1 = arith.constant 0 : i32
    return %c0_i32, %c0_i32_0 : i32, i32
  }
  func.func @transform_1(%arg0: i32) -> (i32, i32) {
    %c0_i32 = arith.constant 0 : i32
    %c0_i32_0 = arith.constant 0 : i32
    %c0_i32_1 = arith.constant 0 : i32
    return %c0_i32, %c0_i32_0 : i32, i32
  }
  func.func @transform_2(%arg0: i32) -> (i32, i32) {
    %c0_i32 = arith.constant 0 : i32
    %c0_i32_0 = arith.constant 0 : i32
    %c0_i32_1 = arith.constant 0 : i32
    return %c0_i32, %c0_i32_0 : i32, i32
  }
  func.func @transform_3(%arg0: i32) -> (i32, i32) {
    %c0_i32 = arith.constant 0 : i32
    %c0_i32_0 = arith.constant 0 : i32
    %c0_i32_1 = arith.constant 0 : i32
    return %c0_i32, %c0_i32_0 : i32, i32
  }
  func.func @transform_4(%arg0: i32) -> (i32, i32) {
    %c0_i32 = arith.constant 0 : i32
    %c0_i32_0 = arith.constant 0 : i32
    %c0_i32_1 = arith.constant 0 : i32
    return %c0_i32, %c0_i32_0 : i32, i32
  }
  func.func @transform_5(%arg0: i32) -> (i32, i32) {
    %c0_i32 = arith.constant 0 : i32
    %c0_i32_0 = arith.constant 0 : i32
    %c0_i32_1 = arith.constant 0 : i32
    return %c0_i32, %c0_i32_0 : i32, i32
  }
  func.func @transform_6(%arg0: i32) -> (i32, i32) {
    %c0_i32 = arith.constant 0 : i32
    %c0_i32_0 = arith.constant 0 : i32
    %c0_i32_1 = arith.constant 0 : i32
    return %c0_i32, %c0_i32_0 : i32, i32
  }
  func.func @transform_7(%arg0: i32) -> (i32, i32) {
    %c0_i32 = arith.constant 0 : i32
    %c0_i32_0 = arith.constant 0 : i32
    %c0_i32_1 = arith.constant 0 : i32
    return %c0_i32, %c0_i32_0 : i32, i32
  }
  func.func @transform_8(%arg0: i32) -> (i32, i32) {
    %c0_i32 = arith.constant 0 : i32
    %c0_i32_0 = arith.constant 0 : i32
    %c0_i32_1 = arith.constant 0 : i32
    return %c0_i32, %c0_i32_0 : i32, i32
  }
}

</mosaic_0001>

<llo_original>
// kernel: policy_forward.1
$region0: #{policy_forward.1}
  #allocation0 [shape = 'u32[]', space=smem, size = 0x4, offset = 0x4, fixed_abs, tag = 'smem constant byte address 0x4 - core index']
  #allocation1 [shape = 'u32[72,128]{1,0:T(1,128)}', space=vmem, size = 0x9000, scoped, tag = 'internal scratch']
  %s0 = inlined_call_operand.vmem [shape: bf16[32,128], index: 0, kind: input, shape index: {}]
  %s1 = inlined_call_operand.vmem [shape: bf16[128,128], index: 1, kind: input, shape index: {}]
  %s2 = inlined_call_operand.vmem [shape: bf16[128,128], index: 2, kind: input, shape index: {}]
  %s3 = inlined_call_operand.vmem [shape: bf16[128,128], index: 3, kind: input, shape index: {}]
  %s4 = inlined_call_operand.vmem [shape: bf16[256,128], index: 4, kind: input, shape index: {}]
  %s5 = inlined_call_operand.vmem [shape: f32[2,128], index: 5, kind: input, shape index: {}]
  %s6 = inlined_call_operand.vmem [shape: bf16[8,128], index: 6, kind: input, shape index: {}]
  %s7 = inlined_call_operand.vmem [shape: s32[2,1], index: 7, kind: input, shape index: {}]
  %s8 = inlined_call_operand.vmem [shape: s32[2,128], index: 8, kind: output, shape index: {}]
  %s9 = sld [smem:[#allocation0]]
  $region42: #{policy_forward.1} parent=0
    _
  %s11 = ssub.s32 1, %s9
  %s12 = scalar_select 0, %s11, %s9
  // Predicated region
  $region2: #{policy_forward.1} parent=0 // pred_check
    _
  $region3: #{policy_forward.1} parent=0 // pred_check_branch
    %14 = sbr.rel (0) target = $region5
  $region4: #{policy_forward.1} parent=0 // pred_region
    _
  $region5: #{policy_forward.1} parent=0 // pred_fallthru
    _
  // Predicated region
  $region6: #{policy_forward.1} parent=0 // pred_check
    _
  $region7: #{policy_forward.1} parent=0 // pred_check_branch
    %16 = sbr.rel (0) target = $region9
  $region8: #{policy_forward.1} parent=0 // pred_region
    _
  $region9: #{policy_forward.1} parent=0 // pred_fallthru
    _
  // Predicated region
  $region10: #{policy_forward.1} parent=0 // pred_check
    _
  $region11: #{policy_forward.1} parent=0 // pred_check_branch
    %18 = sbr.rel (0) target = $region13
  $region12: #{policy_forward.1} parent=0 // pred_region
    _
  $region13: #{policy_forward.1} parent=0 // pred_fallthru
    _
  // Predicated region
  $region14: #{policy_forward.1} parent=0 // pred_check
    _
  $region15: #{policy_forward.1} parent=0 // pred_check_branch
    %20 = sbr.rel (0) target = $region17
  $region16: #{policy_forward.1} parent=0 // pred_region
    _
  $region17: #{policy_forward.1} parent=0 // pred_fallthru
    _
  // Predicated region
  $region18: #{policy_forward.1} parent=0 // pred_check
    _
  $region19: #{policy_forward.1} parent=0 // pred_check_branch
    %22 = sbr.rel (0) target = $region21
  $region20: #{policy_forward.1} parent=0 // pred_region
    _
  $region21: #{policy_forward.1} parent=0 // pred_fallthru
    _
  // Predicated region
  $region22: #{policy_forward.1} parent=0 // pred_check
    _
  $region23: #{policy_forward.1} parent=0 // pred_check_branch
    %24 = sbr.rel (0) target = $region25
  $region24: #{policy_forward.1} parent=0 // pred_region
    _
  $region25: #{policy_forward.1} parent=0 // pred_fallthru
    _
  // Predicated region
  $region26: #{policy_forward.1} parent=0 // pred_check
    _
  $region27: #{policy_forward.1} parent=0 // pred_check_branch
    %26 = sbr.rel (0) target = $region29
  $region28: #{policy_forward.1} parent=0 // pred_region
    _
  $region29: #{policy_forward.1} parent=0 // pred_fallthru
    _
  // Predicated region
  $region30: #{policy_forward.1} parent=0 // pred_check
    _
  $region31: #{policy_forward.1} parent=0 // pred_check_branch
    %28 = sbr.rel (0) target = $region33
  $region32: #{policy_forward.1} parent=0 // pred_region
    _
  $region33: #{policy_forward.1} parent=0 // pred_fallthru
    _
  %v30 = vld [vmem:[%s0] sm:$0xf]
  %v31 = vld [vmem:[%s0 + $0x4] sm:$0xf]
  %v32 = vld [vmem:[%s0 + $0x8] sm:$0xf]
  %v33 = vld [vmem:[%s0 + $0xc] sm:$0xf]
  %v34 = vld [vmem:[%s1] sm:$0xf]
  %v35 = vld [vmem:[%s1 + $0x4] sm:$0xf]
  %v36 = vld [vmem:[%s1 + $0x8] sm:$0xf]
  %v37 = vld [vmem:[%s1 + $0xc] sm:$0xf]
  %v38 = vld [vmem:[%s1 + $0x10] sm:$0xf]
  %v39 = vld [vmem:[%s1 + $0x14] sm:$0xf]
  %v40 = vld [vmem:[%s1 + $0x18] sm:$0xf]
  %v41 = vld [vmem:[%s1 + $0x1c] sm:$0xf]
  %v42 = vld [vmem:[%s1 + $0x20] sm:$0xf]
  %v43 = vld [vmem:[%s1 + $0x24] sm:$0xf]
  %v44 = vld [vmem:[%s1 + $0x28] sm:$0xf]
  %v45 = vld [vmem:[%s1 + $0x2c] sm:$0xf]
  %v46 = vld [vmem:[%s1 + $0x30] sm:$0xf]
  %v47 = vld [vmem:[%s1 + $0x34] sm:$0xf]
  %v48 = vld [vmem:[%s1 + $0x38] sm:$0xf]
  %v49 = vld [vmem:[%s1 + $0x3c] sm:$0xf]
  %v54 = vunpack.c.l.b16 %v30
  %v55 = vunpack.c.l.b16 %v31
  %v56 = vunpack.c.l.b16 %v32
  %v57 = vunpack.c.l.b16 %v33
  %v58 = vpack.c.b16 %v55, %v54
  %v59 = vpack.c.b16 %v57, %v56
  %v78 = vunpack.c.l.b16 %v34
  %v79 = vunpack.c.l.b16 %v35
  %v80 = vunpack.c.l.b16 %v36
  %v81 = vunpack.c.l.b16 %v37
  %v82 = vunpack.c.l.b16 %v38
  %v83 = vunpack.c.l.b16 %v39
  %v84 = vunpack.c.l.b16 %v40
  %v85 = vunpack.c.l.b16 %v41
  %v86 = vunpack.c.l.b16 %v42
  %v87 = vunpack.c.l.b16 %v43
  %v88 = vunpack.c.l.b16 %v44
  %v89 = vunpack.c.l.b16 %v45
  %v90 = vunpack.c.l.b16 %v46
  %v91 = vunpack.c.l.b16 %v47
  %v92 = vunpack.c.l.b16 %v48
  %v93 = vunpack.c.l.b16 %v49
  %v94 = vpack.c.b16 %v79, %v78
  %v95 = vpack.c.b16 %v81, %v80
  %v96 = vpack.c.b16 %v83, %v82
  %v97 = vpack.c.b16 %v85, %v84
  %v98 = vpack.c.b16 %v87, %v86
  %v99 = vpack.c.b16 %v89, %v88
  %v100 = vpack.c.b16 %v91, %v90
  %v101 = vpack.c.b16 %v93, %v92
  %110 = vmatpush.bf16.msra.mxu0 %v101
  %111 = vmatpush.bf16.msra.mxu0 %v100
  %112 = vmatpush.bf16.msra.mxu0 %v99
  %113 = vmatpush.bf16.msra.mxu0 %v98
  %114 = vmatpush.bf16.msra.mxu0 %v97
  %115 = vmatpush.bf16.msra.mxu0 %v96
  %116 = vmatpush.bf16.msra.mxu0 %v95
  %117 = vmatpush.bf16.msra.mxu0 %v94
  %118 = vmatmul.bf16.gmra.mxu0 %v58
  %v119 = vpop.f32.mrf.mxu0
  %v120 = vadd.f32 0.0, %v119
  %v121 = vpop.f32.mrf.mxu0
  %v122 = vadd.f32 0.0, %v121
  %123 = vmatmul.bf16.gmra.mxu0 %v59
  %v124 = vpop.f32.mrf.mxu0
  %v125 = vadd.f32 0.0, %v124
  %v126 = vpop.f32.mrf.mxu0
  %v127 = vadd.f32 0.0, %v126
  %128 = vdwg.mxu0
  %v129 = vpack.c.bf16 %v122, %v120
  %v130 = vpack.c.bf16 %v127, %v125
  %v131 = vlaneseq
  %v132 = vshrl.u32 %v131, 7
  %v133 = vlaneseq
  %v134 = vand.u32 %v133, 127
  %v135 = vadd.s32 %v132, 1
  %v136 = vmul.u32 %v135, 16
  %v137 = vsub.s32 %v136, 1
  %vm138 = vcmp.eq.s32.totalorder %v134, %v137
  %v139 = vsel %vm138, 1, 0
  %v140 = vcvt.s32.f32 %v139
  %v141 = vpack.c.bf16 %v140, %v140
  %vm142 = vcmask 261120
  %v144 = vsel %vm142, %v141, 0
  %146 = vmatpush.bf16.msra.mxu0 0
  %147 = vmatpush.bf16.msra.mxu0 0
  %148 = vmatpush.bf16.msra.mxu0 0
  %149 = vmatpush.bf16.msra.mxu0 0
  %150 = vmatpush.bf16.msra.mxu0 0
  %151 = vmatpush.bf16.msra.mxu0 0
  %152 = vmatpush.bf16.msra.mxu0 %v130
  %153 = vmatpush.bf16.msra.mxu0 %v129
  %154 = vmatmul.bf16.gmra.mxu0 %v144
  %v155 = vpop.f32.mrf.mxu0
  %v156 = vadd.f32 0.0, %v155
  %v157 = vpop.f32.mrf.mxu0
  %158 = vdwg.mxu0
  %v159 = vpack.c.bf16 %v156, %v156
  %v160 = vld [vmem:[%s2] sm:$0xf]
  %v161 = vld [vmem:[%s2 + $0x4] sm:$0xf]
  %v162 = vld [vmem:[%s2 + $0x8] sm:$0xf]
  %v163 = vld [vmem:[%s2 + $0xc] sm:$0xf]
  %v164 = vld [vmem:[%s2 + $0x10] sm:$0xf]
  %v165 = vld [vmem:[%s2 + $0x14] sm:$0xf]
  %v166 = vld [vmem:[%s2 + $0x18] sm:$0xf]
  %v167 = vld [vmem:[%s2 + $0x1c] sm:$0xf]
  %v168 = vld [vmem:[%s2 + $0x20] sm:$0xf]
  %v169 = vld [vmem:[%s2 + $0x24] sm:$0xf]
  %v170 = vld [vmem:[%s2 + $0x28] sm:$0xf]
  %v171 = vld [vmem:[%s2 + $0x2c] sm:$0xf]
  %v172 = vld [vmem:[%s2 + $0x30] sm:$0xf]
  %v173 = vld [vmem:[%s2 + $0x34] sm:$0xf]
  %v174 = vld [vmem:[%s2 + $0x38] sm:$0xf]
  %v175 = vld [vmem:[%s2 + $0x3c] sm:$0xf]
  %v192 = vunpack.c.l.b16 %v160
  %v193 = vunpack.c.l.b16 %v161
  %v194 = vunpack.c.l.b16 %v162
  %v195 = vunpack.c.l.b16 %v163
  %v196 = vunpack.c.l.b16 %v164
  %v197 = vunpack.c.l.b16 %v165
  %v198 = vunpack.c.l.b16 %v166
  %v199 = vunpack.c.l.b16 %v167
  %v200 = vunpack.c.l.b16 %v168
  %v201 = vunpack.c.l.b16 %v169
  %v202 = vunpack.c.l.b16 %v170
  %v203 = vunpack.c.l.b16 %v171
  %v204 = vunpack.c.l.b16 %v172
  %v205 = vunpack.c.l.b16 %v173
  %v206 = vunpack.c.l.b16 %v174
  %v207 = vunpack.c.l.b16 %v175
  %v208 = vpack.c.b16 %v193, %v192
  %v209 = vpack.c.b16 %v195, %v194
  %v210 = vpack.c.b16 %v197, %v196
  %v211 = vpack.c.b16 %v199, %v198
  %v212 = vpack.c.b16 %v201, %v200
  %v213 = vpack.c.b16 %v203, %v202
  %v214 = vpack.c.b16 %v205, %v204
  %v215 = vpack.c.b16 %v207, %v206
  %224 = vmatpush.bf16.msra.mxu0 %v215
  %225 = vmatpush.bf16.msra.mxu0 %v214
  %226 = vmatpush.bf16.msra.mxu0 %v213
  %227 = vmatpush.bf16.msra.mxu0 %v212
  %228 = vmatpush.bf16.msra.mxu0 %v211
  %229 = vmatpush.bf16.msra.mxu0 %v210
  %230 = vmatpush.bf16.msra.mxu0 %v209
  %231 = vmatpush.bf16.msra.mxu0 %v208
  %232 = vmatmul.bf16.gmra.mxu0 %v159
  %v233 = vpop.f32.mrf.mxu0
  %v234 = vadd.f32 0.0, %v233
  %v235 = vpop.f32.mrf.mxu0
  %236 = vdwg.mxu0
  %vm237 = vcmp.lt.s32.totalorder %v134, 64
  %v238 = vsel %vm237, %v234, -inf
  %vm239 = vcmask 1041408
  %v240 = vsel %vm239, %v238, -inf
  %241 = vmax.xlane.f32.xlu0 %v240
  %v242 = vpop.xlane.xlu0 %241
  %vm243 = vcmp.eq.f32.partialorder %v238, %v242
  %v244 = vsel %vm243, %v134, 128
  %v245 = vsel %vm239, %v244, 2147483647
  %v246 = vand.u32 %v245, 65535
  %v247 = vshra.s32 %v245, 16
  %v248 = vcvt.s32.f32 %v246
  %v249 = vcvt.s32.f32 %v247
  %250 = vmin.xlane.f32.xlu0 %v249
  %v251 = vpop.xlane.xlu0 %250
  %vm252 = vcmp.eq.f32.partialorder %v249, %v251
  %v253 = vsel %vm252, %v248, inf
  %254 = vmin.xlane.f32.xlu0 %v253
  %v255 = vpop.xlane.xlu0 %254
  %v256 = vcvt.f32.s32 %v255
  %v257 = vcvt.f32.s32 %v251
  %v258 = vshll.u32 %v257, 16
  %v259 = vadd.s32 %v258, %v256
  %vm260 = vcmp.eq.s32.totalorder %v134, %v259
  %v261 = vsel %vm260, 1, 0
  %v262 = vcvt.s32.f32 %v261
  %v263 = vpack.c.bf16 %v262, %v262
  %v264 = vld [vmem:[%s3] sm:$0xf]
  %v265 = vld [vmem:[%s3 + $0x4] sm:$0xf]
  %v266 = vld [vmem:[%s3 + $0x8] sm:$0xf]
  %v267 = vld [vmem:[%s3 + $0xc] sm:$0xf]
  %v268 = vld [vmem:[%s3 + $0x10] sm:$0xf]
  %v269 = vld [vmem:[%s3 + $0x14] sm:$0xf]
  %v270 = vld [vmem:[%s3 + $0x18] sm:$0xf]
  %v271 = vld [vmem:[%s3 + $0x1c] sm:$0xf]
  %v272 = vld [vmem:[%s3 + $0x20] sm:$0xf]
  %v273 = vld [vmem:[%s3 + $0x24] sm:$0xf]
  %v274 = vld [vmem:[%s3 + $0x28] sm:$0xf]
  %v275 = vld [vmem:[%s3 + $0x2c] sm:$0xf]
  %v276 = vld [vmem:[%s3 + $0x30] sm:$0xf]
  %v277 = vld [vmem:[%s3 + $0x34] sm:$0xf]
  %v278 = vld [vmem:[%s3 + $0x38] sm:$0xf]
  %v279 = vld [vmem:[%s3 + $0x3c] sm:$0xf]
  %v296 = vunpack.c.l.b16 %v264
  %v297 = vunpack.c.l.b16 %v265
  %v298 = vunpack.c.l.b16 %v266
  %v299 = vunpack.c.l.b16 %v267
  %v300 = vunpack.c.l.b16 %v268
  %v301 = vunpack.c.l.b16 %v269
  %v302 = vunpack.c.l.b16 %v270
  %v303 = vunpack.c.l.b16 %v271
  %v304 = vunpack.c.l.b16 %v272
  %v305 = vunpack.c.l.b16 %v273
  %v306 = vunpack.c.l.b16 %v274
  %v307 = vunpack.c.l.b16 %v275
  %v308 = vunpack.c.l.b16 %v276
  %v309 = vunpack.c.l.b16 %v277
  %v310 = vunpack.c.l.b16 %v278
  %v311 = vunpack.c.l.b16 %v279
  %v312 = vpack.c.b16 %v297, %v296
  %v313 = vpack.c.b16 %v299, %v298
  %v314 = vpack.c.b16 %v301, %v300
  %v315 = vpack.c.b16 %v303, %v302
  %v316 = vpack.c.b16 %v305, %v304
  %v317 = vpack.c.b16 %v307, %v306
  %v318 = vpack.c.b16 %v309, %v308
  %v319 = vpack.c.b16 %v311, %v310
  %328 = vmatpush.bf16.msra.mxu0 %v319
  %329 = vmatpush.bf16.msra.mxu0 %v318
  %330 = vmatpush.bf16.msra.mxu0 %v317
  %331 = vmatpush.bf16.msra.mxu0 %v316
  %332 = vmatpush.bf16.msra.mxu0 %v315
  %333 = vmatpush.bf16.msra.mxu0 %v314
  %334 = vmatpush.bf16.msra.mxu0 %v313
  %335 = vmatpush.bf16.msra.mxu0 %v312
  %336 = vmatmul.bf16.gmra.mxu0 %v263
  %v337 = vpop.f32.mrf.mxu0
  %v338 = vadd.f32 0.0, %v337
  %v339 = vpop.f32.mrf.mxu0
  %340 = vdwg.mxu0
  %v341 = vpack.c.bf16 %v338, %v338
  %v342 = vld [vmem:[%s4] sm:$0xf]
  %v343 = vld [vmem:[%s4 + $0x4] sm:$0xf]
  %v344 = vld [vmem:[%s4 + $0x8] sm:$0xf]
  %v345 = vld [vmem:[%s4 + $0xc] sm:$0xf]
  %v346 = vld [vmem:[%s4 + $0x10] sm:$0xf]
  %v347 = vld [vmem:[%s4 + $0x14] sm:$0xf]
  %v348 = vld [vmem:[%s4 + $0x18] sm:$0xf]
  %v349 = vld [vmem:[%s4 + $0x1c] sm:$0xf]
  %v350 = vld [vmem:[%s4 + $0x20] sm:$0xf]
  %v351 = vld [vmem:[%s4 + $0x24] sm:$0xf]
  %v352 = vld [vmem:[%s4 + $0x28] sm:$0xf]
  %v353 = vld [vmem:[%s4 + $0x2c] sm:$0xf]
  %v354 = vld [vmem:[%s4 + $0x30] sm:$0xf]
  %v355 = vld [vmem:[%s4 + $0x34] sm:$0xf]
  %v356 = vld [vmem:[%s4 + $0x38] sm:$0xf]
  %v357 = vld [vmem:[%s4 + $0x3c] sm:$0xf]
  %v358 = vld [vmem:[%s5] sm:$0x1]
  %v359 = vperm.slane %v358, 0
  %v376 = vunpack.c.l.b16 %v342
  %v377 = vunpack.c.l.b16 %v343
  %v378 = vunpack.c.l.b16 %v344
  %v379 = vunpack.c.l.b16 %v345
  %v380 = vunpack.c.l.b16 %v346
  %v381 = vunpack.c.l.b16 %v347
  %v382 = vunpack.c.l.b16 %v348
  %v383 = vunpack.c.l.b16 %v349
  %v384 = vunpack.c.l.b16 %v350
  %v385 = vunpack.c.l.b16 %v351
  %v386 = vunpack.c.l.b16 %v352
  %v387 = vunpack.c.l.b16 %v353
  %v388 = vunpack.c.l.b16 %v354
  %v389 = vunpack.c.l.b16 %v355
  %v390 = vunpack.c.l.b16 %v356
  %v391 = vunpack.c.l.b16 %v357
  %v392 = vpack.c.b16 %v377, %v376
  %v393 = vpack.c.b16 %v379, %v378
  %v394 = vpack.c.b16 %v381, %v380
  %v395 = vpack.c.b16 %v383, %v382
  %v396 = vpack.c.b16 %v385, %v384
  %v397 = vpack.c.b16 %v387, %v386
  %v398 = vpack.c.b16 %v389, %v388
  %v399 = vpack.c.b16 %v391, %v390
  %408 = vmatpush.bf16.msra.mxu0 %v399
  %409 = vmatpush.bf16.msra.mxu0 %v398
  %410 = vmatpush.bf16.msra.mxu0 %v397
  %411 = vmatpush.bf16.msra.mxu0 %v396
  %412 = vmatpush.bf16.msra.mxu0 %v395
  %413 = vmatpush.bf16.msra.mxu0 %v394
  %414 = vmatpush.bf16.msra.mxu0 %v393
  %415 = vmatpush.bf16.msra.mxu0 %v392
  %416 = vmatmul.bf16.gmra.mxu0 %v341
  %v417 = vpop.f32.mrf.mxu0
  %v418 = vadd.f32 %v359, %v417
  %v419 = vpop.f32.mrf.mxu0
  %420 = vdwg.mxu0
  %v421 = vld [vmem:[%s4 + $0x40] sm:$0xf]
  %v422 = vld [vmem:[%s4 + $0x44] sm:$0xf]
  %v423 = vld [vmem:[%s4 + $0x48] sm:$0xf]
  %v424 = vld [vmem:[%s4 + $0x4c] sm:$0xf]
  %v425 = vld [vmem:[%s4 + $0x50] sm:$0xf]
  %v426 = vld [vmem:[%s4 + $0x54] sm:$0xf]
  %v427 = vld [vmem:[%s4 + $0x58] sm:$0xf]
  %v428 = vld [vmem:[%s4 + $0x5c] sm:$0xf]
  %v429 = vld [vmem:[%s4 + $0x60] sm:$0xf]
  %v430 = vld [vmem:[%s4 + $0x64] sm:$0xf]
  %v431 = vld [vmem:[%s4 + $0x68] sm:$0xf]
  %v432 = vld [vmem:[%s4 + $0x6c] sm:$0xf]
  %v433 = vld [vmem:[%s4 + $0x70] sm:$0xf]
  %v434 = vld [vmem:[%s4 + $0x74] sm:$0xf]
  %v435 = vld [vmem:[%s4 + $0x78] sm:$0xf]
  %v436 = vld [vmem:[%s4 + $0x7c] sm:$0xf]
  %v453 = vunpack.c.l.b16 %v421
  %v454 = vunpack.c.l.b16 %v422
  %v455 = vunpack.c.l.b16 %v423
  %v456 = vunpack.c.l.b16 %v424
  %v457 = vunpack.c.l.b16 %v425
  %v458 = vunpack.c.l.b16 %v426
  %v459 = vunpack.c.l.b16 %v427
  %v460 = vunpack.c.l.b16 %v428
  %v461 = vunpack.c.l.b16 %v429
  %v462 = vunpack.c.l.b16 %v430
  %v463 = vunpack.c.l.b16 %v431
  %v464 = vunpack.c.l.b16 %v432
  %v465 = vunpack.c.l.b16 %v433
  %v466 = vunpack.c.l.b16 %v434
  %v467 = vunpack.c.l.b16 %v435
  %v468 = vunpack.c.l.b16 %v436
  %v469 = vpack.c.b16 %v454, %v453
  %v470 = vpack.c.b16 %v456, %v455
  %v471 = vpack.c.b16 %v458, %v457
  %v472 = vpack.c.b16 %v460, %v459
  %v473 = vpack.c.b16 %v462, %v461
  %v474 = vpack.c.b16 %v464, %v463
  %v475 = vpack.c.b16 %v466, %v465
  %v476 = vpack.c.b16 %v468, %v467
  %485 = vmatpush.bf16.msra.mxu0 %v476
  %486 = vmatpush.bf16.msra.mxu0 %v475
  %487 = vmatpush.bf16.msra.mxu0 %v474
  %488 = vmatpush.bf16.msra.mxu0 %v473
  %489 = vmatpush.bf16.msra.mxu0 %v472
  %490 = vmatpush.bf16.msra.mxu0 %v471
  %491 = vmatpush.bf16.msra.mxu0 %v470
  %492 = vmatpush.bf16.msra.mxu0 %v469
  %493 = vmatmul.bf16.gmra.mxu0 %v341
  %v494 = vpop.f32.mrf.mxu0
  %v495 = vadd.f32 0.0, %v494
  %v496 = vpop.f32.mrf.mxu0
  %497 = vdwg.mxu0
  %v498 = vadd.f32 %v418, %v495
  %v499 = vld [vmem:[%s5 + $0x1] sm:$0x1]
  %v500 = vperm.slane %v499, 0
  %v501 = vadd.f32 %v498, %v500
  %v502 = vmul.f32 %v501, 0.5
  %v503 = vld [vmem:[%s7] sm:$0x3]
  %504 = vset.pattern.permute.xlu0 0
  %505 = vperm.xlu0 %504, %v503
  %v506 = vpop.permute.xlu0 %505
  %vm507 = vcmp.eq.s32.totalorder %v134, %v506
  %v508 = vsel %vm507, 1, 0
  %v509 = vcvt.s32.f32 %v508
  %v510 = vpack.c.bf16 %v509, %v509
  %v511 = vld [vmem:[%s6] sm:$0xf]
  %vm512 = vcmask 64512
  %v514 = vsel %vm512, %v510, 0
  %vm516 = vcmask 1043456
  %v518 = vsel %vm516, %v511, 0
  %520 = vmatpush.bf16.msra.mxu0 0
  %521 = vmatpush.bf16.msra.mxu0 0
  %522 = vmatpush.bf16.msra.mxu0 0
  %523 = vmatpush.bf16.msra.mxu0 0
  %524 = vmatpush.bf16.msra.mxu0 0
  %525 = vmatpush.bf16.msra.mxu0 0
  %526 = vmatpush.bf16.msra.mxu0 0
  %527 = vmatpush.bf16.msra.mxu0 %v518
  %528 = vmatmul.bf16.gmra.mxu0 %v514
  %v529 = vpop.f32.mrf.mxu0
  %v530 = vadd.f32 0.0, %v529
  %v531 = vpop.f32.mrf.mxu0
  %532 = vdwg.mxu0
  %vm533 = vcmp.gt.f32.partialorder %v530, 0.5
  %v534 = vsel %vm533, %v502, -inf
  %v535 = vsel %vm239, %v534, -inf
  %536 = vmax.xlane.f32.xlu0 %v535
  %v537 = vpop.xlane.xlu0 %536
  %vm538 = vcmp.eq.f32.partialorder %v534, %v537
  %v539 = vsel %vm538, %v134, 128
  %v540 = vsel %vm239, %v539, 2147483647
  %v541 = vand.u32 %v540, 65535
  %v542 = vshra.s32 %v540, 16
  %v543 = vcvt.s32.f32 %v541
  %v544 = vcvt.s32.f32 %v542
  %545 = vmin.xlane.f32.xlu0 %v544
  %v546 = vpop.xlane.xlu0 %545
  %vm547 = vcmp.eq.f32.partialorder %v544, %v546
  %v548 = vsel %vm547, %v543, inf
  %549 = vmin.xlane.f32.xlu0 %v548
  %v550 = vpop.xlane.xlu0 %549
  %v551 = vcvt.f32.s32 %v550
  %v552 = vcvt.f32.s32 %v546
  %v553 = vshll.u32 %v552, 16
  %v554 = vadd.s32 %v553, %v551
  %555 = vst [vmem:[%s8] sm:$0x3] %v554
  // Predicated region
  $region34: #{policy_forward.1} parent=0 // pred_check
    _
  $region35: #{policy_forward.1} parent=0 // pred_check_branch
    %557 = sbr.rel (0) target = $region37
  $region36: #{policy_forward.1} parent=0 // pred_region
    _
  $region37: #{policy_forward.1} parent=0 // pred_fallthru
    _
  // Predicated region
  $region38: #{policy_forward.1} parent=0 // pred_check
    _
  $region39: #{policy_forward.1} parent=0 // pred_check_branch
    %559 = sbr.rel (0) target = $region41
  $region40: #{policy_forward.1} parent=0 // pred_region
    _
  $region41: #{policy_forward.1} parent=0 // pred_fallthru
    _

</llo_original>
